<compile_context>
chip_gen: v7x
topology: tpu7x:2x2x1
jax: 0.10.0
libtpu: 0.0.40
codegen_flags: <defaults>
</compile_context>

<pallas_src>
import functools

import jax
import jax.numpy as jnp
from jax import lax
from jax.experimental import pallas as pl
from jax.experimental.pallas import tpu as pltpu


def im_kernel(x_ref, w_ref, b_ref, o_ref, *, order):
    # x_ref: (F, NC, D, CH) VMEM   batch chunks on lanes
    # w_ref: (order, D, 1) VMEM    fc weight, one (D, 1) row per term
    # b_ref: (1, 1) SMEM           fc bias (scalar)
    # o_ref: (NC, 1, CH) VMEM      lane-dense per-chunk output rows
    F, NC, D, CH = x_ref.shape
    bias = b_ref[0, 0]

    @pl.loop(0, NC)
    def _(c):
        # ---- power sums over fields -----------------------------------
        # Accumulators are (D, CH); CH was chosen so p1..p_order plus the
        # running power chain stay register-resident for the whole field
        # loop (Q of the reference is never materialized).
        zeros = jnp.zeros((D, CH), jnp.float32)

        def field_body(f, p):
            xf = x_ref[f, c, :, :].astype(jnp.float32)        # (D, CH)
            q = xf
            new_p = [p[0] + q]
            for k in range(1, order):
                q = q * xf                                    # x ** (k + 1)
                new_p.append(p[k] + q)
            return tuple(new_p)

        p = lax.fori_loop(0, F, field_body, (zeros,) * order, unroll=True)

        # ---- Newton-Girard recurrence, fused with the Linear weights ---
        #   e_k = (1/k) * sum_{i=1..k} (-1)^(i-1) e_{k-i} * p_i,  e_0 = 1
        # (identical to the expanded second..fifth_order formulas).
        # Weight rows are loaded from VMEM right where they are used so they
        # do not pin vregs across the field loop above.
        es = [p[0]]                                           # e_1 = p_1
        acc = p[0] * w_ref[0].astype(jnp.float32)
        for k in range(2, order + 1):
            t = es[k - 2] * p[0]                              # i = 1 term (+)
            for i in range(2, k + 1):
                term = p[i - 1] if i == k else es[k - i - 1] * p[i - 1]
                t = t + term if (i % 2 == 1) else t - term
            ek = t * (1.0 / k)
            es.append(ek)
            acc = acc + ek * w_ref[k - 1].astype(jnp.float32)

        # One cross-sublane reduction per chunk; lane-dense store.
        y = jnp.sum(acc, axis=0) + bias                       # (CH,)
        o_ref[c] = y[None, :].astype(o_ref.dtype)


def _pick_chunk(D, order, b_lane):
    """Lane-chunk width so that the per-chunk accumulators fit in vregs."""
    live_tiles = max(4, 2 * order)           # p1..p_order + e_k / acc temps
    vregs_per_128_lanes = max(1, -(-D // 8))  # ceil(D / 8)
    budget = 44                               # of 64 vregs; leave scheduler slack
    n = max(1, budget // (live_tiles * vregs_per_128_lanes))
    return min(128 * n, b_lane)


def interaction_machine(x, w, b, *, order, tb=4096):
    """Forward pass of FuxiCTR InteractionMachine (batch_norm=False).

    x: (B, F, D) float;  w: (order, D) fc weight (row k <-> k-th interaction
    term, i.e. torch's (1, order*D) weight reshaped);  b: fc bias, any shape
    with one element.  Returns (B, 1) float32.
    """
    B, F, D = x.shape
    assert 1 <= order <= 5, f"order={order} is not supported."
    assert w.shape == (order, D)

    b_lane = pl.cdiv(B, 128) * 128
    chunk = _pick_chunk(D, order, b_lane)
    nc = pl.cdiv(B, chunk)                    # number of 128-aligned lane chunks

    # Chunks per grid step: target ~tb lanes per step, capped by (a) the batch,
    # (b) a conservative scoped-VMEM budget for the double-buffered X block,
    # and (c) keeping >= 2 grid steps when the batch allows (v7x megacore).
    itemsize = jnp.dtype(x.dtype).itemsize
    nc_tile = max(1, tb // chunk)
    nc_tile = min(nc_tile, nc)
    nc_tile = min(nc_tile, max(1, (12 * 2**20) // (2 * F * D * chunk * itemsize)))
    if nc >= 2:
        nc_tile = min(nc_tile, max(1, nc // 2))
    nc_pad = pl.cdiv(nc, nc_tile) * nc_tile
    B_pad = nc_pad * chunk

    # Layout pass: (B, F, D) -> (F, NC, D, CH).  Input dtype is preserved
    # through the DMA (kernel upcasts per field).  Padded lanes are zeros and
    # only contribute the bias, which is sliced away below.
    if B_pad != B:
        x = jnp.pad(x, ((0, B_pad - B), (0, 0), (0, 0)))
    xt = x.reshape(nc_pad, chunk, F, D).transpose(2, 0, 3, 1)   # (F, NC, D, CH)

    w3 = w.reshape(order, D, 1)
    b2 = jnp.asarray(b, jnp.float32).reshape(1, 1)

    out = pl.pallas_call(
        functools.partial(im_kernel, order=order),
        out_shape=jax.ShapeDtypeStruct((nc_pad, 1, chunk), jnp.float32),
        grid=(nc_pad // nc_tile,),
        in_specs=[
            pl.BlockSpec((F, nc_tile, D, chunk), lambda i: (0, i, 0, 0)),
            pl.BlockSpec((order, D, 1), lambda i: (0, 0, 0)),        # resident
            pl.BlockSpec(memory_space=pltpu.MemorySpace.SMEM),       # bias
        ],
        out_specs=pl.BlockSpec((nc_tile, 1, chunk), lambda i: (i, 0, 0)),
        compiler_params=pltpu.CompilerParams(
            dimension_semantics=("parallel",)),
    )(xt, w3, b2)

    return out.reshape(B_pad)[:B, None]


def interaction_machine_ref(x, w, b, *, order):
    """Pure-JAX reference mirroring the PyTorch forward exactly."""
    p1 = jnp.sum(x, axis=1)
    out = [p1]
    Q = x
    if order >= 2:
        Q = Q * x
        p2 = jnp.sum(Q, axis=1)
        out.append((p1 ** 2 - p2) / 2)
    if order >= 3:
        Q = Q * x
        p3 = jnp.sum(Q, axis=1)
        out.append((p1 ** 3 - 3 * p1 * p2 + 2 * p3) / 6)
    if order >= 4:
        Q = Q * x
        p4 = jnp.sum(Q, axis=1)
        out.append((p1 ** 4 - 6 * p1 ** 2 * p2 + 3 * p2 ** 2 + 8 * p1 * p3 - 6 * p4) / 24)
    if order >= 5:
        Q = Q * x
        p5 = jnp.sum(Q, axis=1)
        out.append((p1 ** 5 - 10 * p1 ** 3 * p2 + 20 * p1 ** 2 * p3 - 30 * p1 * p4
                    - 20 * p2 * p3 + 15 * p1 * p2 ** 2 + 24 * p5) / 120)
    feat = jnp.concatenate(out, axis=-1)               # (B, order*D)
    return feat @ w.reshape(order * x.shape[2])[:, None] + jnp.asarray(b).reshape(())


if __name__ == "__main__":
    B, F, D = 16, 10, 32
    key = jax.random.PRNGKey(0)
    kx, kw, kb = jax.random.split(key, 3)
    x = jax.random.normal(kx, (B, F, D), dtype=jnp.float32)

    for ORDER in (5, 2, 1):
        # nn.Linear(order*D, 1): weight (1, order*D), bias (1,). Deterministic.
        fc_w = (jax.random.uniform(kw, (1, ORDER * D), dtype=jnp.float32) - 0.5) * 0.2
        fc_b = (jax.random.uniform(kb, (1,), dtype=jnp.float32) - 0.5) * 0.2

        w = fc_w.reshape(ORDER, D)       # row k <-> k-th interaction term
        b = fc_b.reshape(1, 1)

        y = interaction_machine(x, w, b, order=ORDER)
        y = jax.block_until_ready(y)

        y_ref = interaction_machine_ref(x, w, b, order=ORDER)
        assert y.shape == (B, 1)
        assert jnp.allclose(y, y_ref, atol=2e-4, rtol=2e-4), (ORDER, y, y_ref)

    print("KERNEL_OK")
</pallas_src>

<mosaic_0001>
module attributes {stable_mosaic.version = 11 : i64} {
  func.func @im_kernel(%arg0: i32, %arg1: memref<10x1x32x128xf32, #tpu.memory_space<vmem>>, %arg2: memref<5x32x1xf32, #tpu.memory_space<vmem>>, %arg3: memref<1x1xf32, #tpu.memory_space<smem>>, %arg4: memref<1x1x128xf32, #tpu.memory_space<vmem>>) attributes {dimension_semantics = [#tpu.dimension_semantics<parallel>], iteration_bounds = array<i64: 1>, scalar_prefetch = 0 : i64, scratch_operands = 0 : i64, tpu.core_type = #tpu.core_type<tc>, window_params = [{transform_indices = @transform_0, window_bounds = array<i64: 10, 1, 32, 128>}, {pipeline_mode = #tpu.pipeline_mode<synchronous>, transform_indices = @transform_1, window_bounds = array<i64: 5, 32, 1>}, {transform_indices = @transform_2, window_bounds = array<i64: 1, 1>}, {transform_indices = @transform_3, window_bounds = array<i64: 1, 1, 128>}]} {
    %c0 = arith.constant 0 : index
    %c0_0 = arith.constant 0 : index
    %0 = memref.load %arg3[%c0, %c0_0] : memref<1x1xf32, #tpu.memory_space<smem>>
    %c0_i32 = arith.constant 0 : i32
    %c1_i32 = arith.constant 1 : i32
    %1 = arith.muli %c0_i32, %c1_i32 : i32
    %c0_i32_1 = arith.constant 0 : i32
    %2 = arith.addi %c0_i32_1, %1 : i32
    %cst = arith.constant 0.000000e+00 : f32
    %3 = vector.broadcast %cst : f32 to vector<32x128xf32>
    %c0_i32_2 = arith.constant 0 : i32
    %4 = arith.index_cast %c0_i32_2 : i32 to index
    %5 = arith.index_cast %2 : i32 to index
    %c0_3 = arith.constant 0 : index
    %c0_4 = arith.constant 0 : index
    %6 = vector.load %arg1[%4, %5, %c0_3, %c0_4] : memref<10x1x32x128xf32, #tpu.memory_space<vmem>>, vector<1x1x32x128xf32>
    %7 = vector.shape_cast %6 : vector<1x1x32x128xf32> to vector<32x128xf32>
    %8 = arith.addf %3, %7 : vector<32x128xf32>
    %9 = arith.mulf %7, %7 : vector<32x128xf32>
    %10 = arith.addf %3, %9 : vector<32x128xf32>
    %11 = arith.mulf %9, %7 : vector<32x128xf32>
    %12 = arith.addf %3, %11 : vector<32x128xf32>
    %13 = arith.mulf %11, %7 : vector<32x128xf32>
    %14 = arith.addf %3, %13 : vector<32x128xf32>
    %15 = arith.mulf %13, %7 : vector<32x128xf32>
    %16 = arith.addf %3, %15 : vector<32x128xf32>
    %c1_i32_5 = arith.constant 1 : i32
    %17 = arith.index_cast %c1_i32_5 : i32 to index
    %18 = arith.index_cast %2 : i32 to index
    %c0_6 = arith.constant 0 : index
    %c0_7 = arith.constant 0 : index
    %19 = vector.load %arg1[%17, %18, %c0_6, %c0_7] : memref<10x1x32x128xf32, #tpu.memory_space<vmem>>, vector<1x1x32x128xf32>
    %20 = vector.shape_cast %19 : vector<1x1x32x128xf32> to vector<32x128xf32>
    %21 = arith.addf %8, %20 : vector<32x128xf32>
    %22 = arith.mulf %20, %20 : vector<32x128xf32>
    %23 = arith.addf %10, %22 : vector<32x128xf32>
    %24 = arith.mulf %22, %20 : vector<32x128xf32>
    %25 = arith.addf %12, %24 : vector<32x128xf32>
    %26 = arith.mulf %24, %20 : vector<32x128xf32>
    %27 = arith.addf %14, %26 : vector<32x128xf32>
    %28 = arith.mulf %26, %20 : vector<32x128xf32>
    %29 = arith.addf %16, %28 : vector<32x128xf32>
    %c2_i32 = arith.constant 2 : i32
    %30 = arith.index_cast %c2_i32 : i32 to index
    %31 = arith.index_cast %2 : i32 to index
    %c0_8 = arith.constant 0 : index
    %c0_9 = arith.constant 0 : index
    %32 = vector.load %arg1[%30, %31, %c0_8, %c0_9] : memref<10x1x32x128xf32, #tpu.memory_space<vmem>>, vector<1x1x32x128xf32>
    %33 = vector.shape_cast %32 : vector<1x1x32x128xf32> to vector<32x128xf32>
    %34 = arith.addf %21, %33 : vector<32x128xf32>
    %35 = arith.mulf %33, %33 : vector<32x128xf32>
    %36 = arith.addf %23, %35 : vector<32x128xf32>
    %37 = arith.mulf %35, %33 : vector<32x128xf32>
    %38 = arith.addf %25, %37 : vector<32x128xf32>
    %39 = arith.mulf %37, %33 : vector<32x128xf32>
    %40 = arith.addf %27, %39 : vector<32x128xf32>
    %41 = arith.mulf %39, %33 : vector<32x128xf32>
    %42 = arith.addf %29, %41 : vector<32x128xf32>
    %c3_i32 = arith.constant 3 : i32
    %43 = arith.index_cast %c3_i32 : i32 to index
    %44 = arith.index_cast %2 : i32 to index
    %c0_10 = arith.constant 0 : index
    %c0_11 = arith.constant 0 : index
    %45 = vector.load %arg1[%43, %44, %c0_10, %c0_11] : memref<10x1x32x128xf32, #tpu.memory_space<vmem>>, vector<1x1x32x128xf32>
    %46 = vector.shape_cast %45 : vector<1x1x32x128xf32> to vector<32x128xf32>
    %47 = arith.addf %34, %46 : vector<32x128xf32>
    %48 = arith.mulf %46, %46 : vector<32x128xf32>
    %49 = arith.addf %36, %48 : vector<32x128xf32>
    %50 = arith.mulf %48, %46 : vector<32x128xf32>
    %51 = arith.addf %38, %50 : vector<32x128xf32>
    %52 = arith.mulf %50, %46 : vector<32x128xf32>
    %53 = arith.addf %40, %52 : vector<32x128xf32>
    %54 = arith.mulf %52, %46 : vector<32x128xf32>
    %55 = arith.addf %42, %54 : vector<32x128xf32>
    %c4_i32 = arith.constant 4 : i32
    %56 = arith.index_cast %c4_i32 : i32 to index
    %57 = arith.index_cast %2 : i32 to index
    %c0_12 = arith.constant 0 : index
    %c0_13 = arith.constant 0 : index
    %58 = vector.load %arg1[%56, %57, %c0_12, %c0_13] : memref<10x1x32x128xf32, #tpu.memory_space<vmem>>, vector<1x1x32x128xf32>
    %59 = vector.shape_cast %58 : vector<1x1x32x128xf32> to vector<32x128xf32>
    %60 = arith.addf %47, %59 : vector<32x128xf32>
    %61 = arith.mulf %59, %59 : vector<32x128xf32>
    %62 = arith.addf %49, %61 : vector<32x128xf32>
    %63 = arith.mulf %61, %59 : vector<32x128xf32>
    %64 = arith.addf %51, %63 : vector<32x128xf32>
    %65 = arith.mulf %63, %59 : vector<32x128xf32>
    %66 = arith.addf %53, %65 : vector<32x128xf32>
    %67 = arith.mulf %65, %59 : vector<32x128xf32>
    %68 = arith.addf %55, %67 : vector<32x128xf32>
    %c5_i32 = arith.constant 5 : i32
    %69 = arith.index_cast %c5_i32 : i32 to index
    %70 = arith.index_cast %2 : i32 to index
    %c0_14 = arith.constant 0 : index
    %c0_15 = arith.constant 0 : index
    %71 = vector.load %arg1[%69, %70, %c0_14, %c0_15] : memref<10x1x32x128xf32, #tpu.memory_space<vmem>>, vector<1x1x32x128xf32>
    %72 = vector.shape_cast %71 : vector<1x1x32x128xf32> to vector<32x128xf32>
    %73 = arith.addf %60, %72 : vector<32x128xf32>
    %74 = arith.mulf %72, %72 : vector<32x128xf32>
    %75 = arith.addf %62, %74 : vector<32x128xf32>
    %76 = arith.mulf %74, %72 : vector<32x128xf32>
    %77 = arith.addf %64, %76 : vector<32x128xf32>
    %78 = arith.mulf %76, %72 : vector<32x128xf32>
    %79 = arith.addf %66, %78 : vector<32x128xf32>
    %80 = arith.mulf %78, %72 : vector<32x128xf32>
    %81 = arith.addf %68, %80 : vector<32x128xf32>
    %c6_i32 = arith.constant 6 : i32
    %82 = arith.index_cast %c6_i32 : i32 to index
    %83 = arith.index_cast %2 : i32 to index
    %c0_16 = arith.constant 0 : index
    %c0_17 = arith.constant 0 : index
    %84 = vector.load %arg1[%82, %83, %c0_16, %c0_17] : memref<10x1x32x128xf32, #tpu.memory_space<vmem>>, vector<1x1x32x128xf32>
    %85 = vector.shape_cast %84 : vector<1x1x32x128xf32> to vector<32x128xf32>
    %86 = arith.addf %73, %85 : vector<32x128xf32>
    %87 = arith.mulf %85, %85 : vector<32x128xf32>
    %88 = arith.addf %75, %87 : vector<32x128xf32>
    %89 = arith.mulf %87, %85 : vector<32x128xf32>
    %90 = arith.addf %77, %89 : vector<32x128xf32>
    %91 = arith.mulf %89, %85 : vector<32x128xf32>
    %92 = arith.addf %79, %91 : vector<32x128xf32>
    %93 = arith.mulf %91, %85 : vector<32x128xf32>
    %94 = arith.addf %81, %93 : vector<32x128xf32>
    %c7_i32 = arith.constant 7 : i32
    %95 = arith.index_cast %c7_i32 : i32 to index
    %96 = arith.index_cast %2 : i32 to index
    %c0_18 = arith.constant 0 : index
    %c0_19 = arith.constant 0 : index
    %97 = vector.load %arg1[%95, %96, %c0_18, %c0_19] : memref<10x1x32x128xf32, #tpu.memory_space<vmem>>, vector<1x1x32x128xf32>
    %98 = vector.shape_cast %97 : vector<1x1x32x128xf32> to vector<32x128xf32>
    %99 = arith.addf %86, %98 : vector<32x128xf32>
    %100 = arith.mulf %98, %98 : vector<32x128xf32>
    %101 = arith.addf %88, %100 : vector<32x128xf32>
    %102 = arith.mulf %100, %98 : vector<32x128xf32>
    %103 = arith.addf %90, %102 : vector<32x128xf32>
    %104 = arith.mulf %102, %98 : vector<32x128xf32>
    %105 = arith.addf %92, %104 : vector<32x128xf32>
    %106 = arith.mulf %104, %98 : vector<32x128xf32>
    %107 = arith.addf %94, %106 : vector<32x128xf32>
    %c8_i32 = arith.constant 8 : i32
    %108 = arith.index_cast %c8_i32 : i32 to index
    %109 = arith.index_cast %2 : i32 to index
    %c0_20 = arith.constant 0 : index
    %c0_21 = arith.constant 0 : index
    %110 = vector.load %arg1[%108, %109, %c0_20, %c0_21] : memref<10x1x32x128xf32, #tpu.memory_space<vmem>>, vector<1x1x32x128xf32>
    %111 = vector.shape_cast %110 : vector<1x1x32x128xf32> to vector<32x128xf32>
    %112 = arith.addf %99, %111 : vector<32x128xf32>
    %113 = arith.mulf %111, %111 : vector<32x128xf32>
    %114 = arith.addf %101, %113 : vector<32x128xf32>
    %115 = arith.mulf %113, %111 : vector<32x128xf32>
    %116 = arith.addf %103, %115 : vector<32x128xf32>
    %117 = arith.mulf %115, %111 : vector<32x128xf32>
    %118 = arith.addf %105, %117 : vector<32x128xf32>
    %119 = arith.mulf %117, %111 : vector<32x128xf32>
    %120 = arith.addf %107, %119 : vector<32x128xf32>
    %c9_i32 = arith.constant 9 : i32
    %121 = arith.index_cast %c9_i32 : i32 to index
    %122 = arith.index_cast %2 : i32 to index
    %c0_22 = arith.constant 0 : index
    %c0_23 = arith.constant 0 : index
    %123 = vector.load %arg1[%121, %122, %c0_22, %c0_23] : memref<10x1x32x128xf32, #tpu.memory_space<vmem>>, vector<1x1x32x128xf32>
    %124 = vector.shape_cast %123 : vector<1x1x32x128xf32> to vector<32x128xf32>
    %125 = arith.addf %112, %124 : vector<32x128xf32>
    %126 = arith.mulf %124, %124 : vector<32x128xf32>
    %127 = arith.addf %114, %126 : vector<32x128xf32>
    %128 = arith.mulf %126, %124 : vector<32x128xf32>
    %129 = arith.addf %116, %128 : vector<32x128xf32>
    %130 = arith.mulf %128, %124 : vector<32x128xf32>
    %131 = arith.addf %118, %130 : vector<32x128xf32>
    %132 = arith.mulf %130, %124 : vector<32x128xf32>
    %133 = arith.addf %120, %132 : vector<32x128xf32>
    %c10_i32 = arith.constant 10 : i32
    %c0_24 = arith.constant 0 : index
    %c0_25 = arith.constant 0 : index
    %c0_26 = arith.constant 0 : index
    %134 = vector.load %arg2[%c0_24, %c0_25, %c0_26] : memref<5x32x1xf32, #tpu.memory_space<vmem>>, vector<1x32x1xf32>
    %135 = vector.shape_cast %134 : vector<1x32x1xf32> to vector<32x1xf32>
    %136 = vector.broadcast %135 : vector<32x1xf32> to vector<32x128xf32>
    %137 = arith.mulf %125, %136 : vector<32x128xf32>
    %138 = arith.mulf %125, %125 : vector<32x128xf32>
    %139 = arith.subf %138, %127 : vector<32x128xf32>
    %cst_27 = arith.constant 5.000000e-01 : f32
    %140 = vector.broadcast %cst_27 : f32 to vector<32x128xf32>
    %141 = arith.mulf %139, %140 : vector<32x128xf32>
    %c1 = arith.constant 1 : index
    %c0_28 = arith.constant 0 : index
    %c0_29 = arith.constant 0 : index
    %142 = vector.load %arg2[%c1, %c0_28, %c0_29] : memref<5x32x1xf32, #tpu.memory_space<vmem>>, vector<1x32x1xf32>
    %143 = vector.shape_cast %142 : vector<1x32x1xf32> to vector<32x1xf32>
    %144 = vector.broadcast %143 : vector<32x1xf32> to vector<32x128xf32>
    %145 = arith.mulf %141, %144 : vector<32x128xf32>
    %146 = arith.addf %137, %145 : vector<32x128xf32>
    %147 = arith.mulf %141, %125 : vector<32x128xf32>
    %148 = arith.mulf %125, %127 : vector<32x128xf32>
    %149 = arith.subf %147, %148 : vector<32x128xf32>
    %150 = arith.addf %149, %129 : vector<32x128xf32>
    %cst_30 = arith.constant 0.333333343 : f32
    %151 = vector.broadcast %cst_30 : f32 to vector<32x128xf32>
    %152 = arith.mulf %150, %151 : vector<32x128xf32>
    %c2 = arith.constant 2 : index
    %c0_31 = arith.constant 0 : index
    %c0_32 = arith.constant 0 : index
    %153 = vector.load %arg2[%c2, %c0_31, %c0_32] : memref<5x32x1xf32, #tpu.memory_space<vmem>>, vector<1x32x1xf32>
    %154 = vector.shape_cast %153 : vector<1x32x1xf32> to vector<32x1xf32>
    %155 = vector.broadcast %154 : vector<32x1xf32> to vector<32x128xf32>
    %156 = arith.mulf %152, %155 : vector<32x128xf32>
    %157 = arith.addf %146, %156 : vector<32x128xf32>
    %158 = arith.mulf %152, %125 : vector<32x128xf32>
    %159 = arith.mulf %141, %127 : vector<32x128xf32>
    %160 = arith.subf %158, %159 : vector<32x128xf32>
    %161 = arith.mulf %125, %129 : vector<32x128xf32>
    %162 = arith.addf %160, %161 : vector<32x128xf32>
    %163 = arith.subf %162, %131 : vector<32x128xf32>
    %cst_33 = arith.constant 2.500000e-01 : f32
    %164 = vector.broadcast %cst_33 : f32 to vector<32x128xf32>
    %165 = arith.mulf %163, %164 : vector<32x128xf32>
    %c3 = arith.constant 3 : index
    %c0_34 = arith.constant 0 : index
    %c0_35 = arith.constant 0 : index
    %166 = vector.load %arg2[%c3, %c0_34, %c0_35] : memref<5x32x1xf32, #tpu.memory_space<vmem>>, vector<1x32x1xf32>
    %167 = vector.shape_cast %166 : vector<1x32x1xf32> to vector<32x1xf32>
    %168 = vector.broadcast %167 : vector<32x1xf32> to vector<32x128xf32>
    %169 = arith.mulf %165, %168 : vector<32x128xf32>
    %170 = arith.addf %157, %169 : vector<32x128xf32>
    %171 = arith.mulf %165, %125 : vector<32x128xf32>
    %172 = arith.mulf %152, %127 : vector<32x128xf32>
    %173 = arith.subf %171, %172 : vector<32x128xf32>
    %174 = arith.mulf %141, %129 : vector<32x128xf32>
    %175 = arith.addf %173, %174 : vector<32x128xf32>
    %176 = arith.mulf %125, %131 : vector<32x128xf32>
    %177 = arith.subf %175, %176 : vector<32x128xf32>
    %178 = arith.addf %177, %133 : vector<32x128xf32>
    %cst_36 = arith.constant 2.000000e-01 : f32
    %179 = vector.broadcast %cst_36 : f32 to vector<32x128xf32>
    %180 = arith.mulf %178, %179 : vector<32x128xf32>
    %c4 = arith.constant 4 : index
    %c0_37 = arith.constant 0 : index
    %c0_38 = arith.constant 0 : index
    %181 = vector.load %arg2[%c4, %c0_37, %c0_38] : memref<5x32x1xf32, #tpu.memory_space<vmem>>, vector<1x32x1xf32>
    %182 = vector.shape_cast %181 : vector<1x32x1xf32> to vector<32x1xf32>
    %183 = vector.broadcast %182 : vector<32x1xf32> to vector<32x128xf32>
    %184 = arith.mulf %180, %183 : vector<32x128xf32>
    %185 = arith.addf %170, %184 : vector<32x128xf32>
    %cst_39 = arith.constant dense<0.000000e+00> : vector<128xf32>
    %186 = vector.multi_reduction <add>, %185, %cst_39 [0] : vector<32x128xf32> to vector<128xf32>
    %187 = vector.broadcast %0 : f32 to vector<128xf32>
    %188 = arith.addf %186, %187 : vector<128xf32>
    %189 = vector.shape_cast %188 : vector<128xf32> to vector<1x128xf32>
    %190 = arith.index_cast %2 : i32 to index
    %c0_40 = arith.constant 0 : index
    %c0_41 = arith.constant 0 : index
    %191 = vector.load %arg4[%190, %c0_40, %c0_41] : memref<1x1x128xf32, #tpu.memory_space<vmem>>, vector<1x1x128xf32>
    %192 = vector.shape_cast %191 : vector<1x1x128xf32> to vector<1x128xf32>
    %193 = vector.shape_cast %189 : vector<1x128xf32> to vector<1x1x128xf32>
    tpu.vector_store %arg4[%190, %c0_40, %c0_41], %193 {strides = array<i32>} : memref<1x1x128xf32, #tpu.memory_space<vmem>>, vector<1x1x128xf32>,
    %c1_i32_42 = arith.constant 1 : i32
    return
  }
  func.func @transform_0(%arg0: i32) -> (i32, i32, i32, i32) {
    %c0_i32 = arith.constant 0 : i32
    %c0_i32_0 = arith.constant 0 : i32
    %c0_i32_1 = arith.constant 0 : i32
    %c0_i32_2 = arith.constant 0 : i32
    return %c0_i32, %arg0, %c0_i32_0, %c0_i32_1 : i32, i32, i32, i32
  }
  func.func @transform_1(%arg0: i32) -> (i32, i32, i32) {
    %c0_i32 = arith.constant 0 : i32
    %c0_i32_0 = arith.constant 0 : i32
    %c0_i32_1 = arith.constant 0 : i32
    %c0_i32_2 = arith.constant 0 : i32
    return %c0_i32, %c0_i32_0, %c0_i32_1 : i32, i32, i32
  }
  func.func @transform_2(%arg0: i32) -> (i32, i32) {
    %c0_i32 = arith.constant 0 : i32
    %c0_i32_0 = arith.constant 0 : i32
    %c0_i32_1 = arith.constant 0 : i32
    return %c0_i32, %c0_i32_0 : i32, i32
  }
  func.func @transform_3(%arg0: i32) -> (i32, i32, i32) {
    %c0_i32 = arith.constant 0 : i32
    %c0_i32_0 = arith.constant 0 : i32
    %c0_i32_1 = arith.constant 0 : i32
    return %arg0, %c0_i32, %c0_i32_0 : i32, i32, i32
  }
}

</mosaic_0001>

<llo_original>
// kernel: tpu_custom_call.1
$region0: #{tpu_custom_call.1}
  #allocation0 [shape = 'u32[]', space=smem, size = 0x4, offset = 0x4, fixed_abs, tag = 'smem constant byte address 0x4 - core index']
  #allocation1 [shape = 'u32[144,128]{1,0:T(1,128)}', space=vmem, size = 0x12000, scoped, tag = 'internal scratch']
  #allocation2 [shape = 'f32[1,1]{1,0:T(1,128)S(6)}', space=smem, size = 0x200, scoped, tag = 'scoped memory for tpu_custom_call.1']
  %s0 = inlined_call_operand.hbm [shape: f32[10,1,32,128], index: 0, kind: input, shape index: {}]
  %s1 = inlined_call_operand.vmem [shape: f32[5,32,1], index: 1, kind: input, shape index: {}]
  %s2 = inlined_call_operand.<no memory space> [shape: f32[1,1], index: 2, kind: input, shape index: {}]
  %s3 = inlined_call_operand.hbm [shape: f32[1,1,128], index: 3, kind: output, shape index: {}]
  %s4 = sld [smem:[#allocation0]]
  $region26: #{tpu_custom_call.1} parent=0
    _
  %s6 = ssub.s32 1, %s4
  %s7 = scalar_select 0, %s6, %s4
  %8 = sst [smem:[#allocation2]] %s2
  $region1: #{tpu_custom_call.1} parent=0
    #allocation3 [shape = 'u8[163840]{0}', space=vmem, size = 0x28000, scoped, tag = 'input window, operand 0, single buffered']
    #allocation4 [shape = 's32[1]{0}', space=sflag, size = 0x4, scoped, tag = 'scoped memory for tpu_custom_call.1']
    #allocation5 [shape = 's32[1]{0}', space=sflag, size = 0x4, scoped, tag = 'scoped memory for tpu_custom_call.1']
    #allocation6 [shape = 'u8[512]{0}', space=vmem, size = 0x400, scoped, tag = 'output window, operand 0, single buffered']
    %9 = vsyncpa [#allocation4], 0
    %10 = vsyncpa [#allocation5], 0
    // Predicated region
    $region2: #{tpu_custom_call.1} parent=1 // pred_check
      _
    $region3: #{tpu_custom_call.1} parent=1 // pred_check_branch
      %12 = sbr.rel (0) target = $region5
    $region4: #{tpu_custom_call.1} parent=1 // pred_region
      %s14 = ssub.s32 5120, 5120
      %15 = vsyncadd [#allocation4], %s14
      %s16 = sshll.u32 [#allocation3], 4
      %s17 = int_to_ptr.vmem [resolvable:$true] %s16
      %22 = dma.hbm_to_vmem [thread:$0]  %s0, 5120, %s17, [#allocation4], 128, 128, 8
    $region5: #{tpu_custom_call.1} parent=1 // pred_fallthru
      _
    // Predicated region
    $region6: #{tpu_custom_call.1} parent=1 // pred_check
      _
    $region7: #{tpu_custom_call.1} parent=1 // pred_check_branch
      %24 = sbr.rel (0) target = $region9
    $region8: #{tpu_custom_call.1} parent=1 // pred_region
      _
    $region9: #{tpu_custom_call.1} parent=1 // pred_fallthru
      _
    // Predicated region
    $region10: #{tpu_custom_call.1} parent=1 // pred_check
      _
    $region11: #{tpu_custom_call.1} parent=1 // pred_check_branch
      %26 = sbr.rel (0) target = $region13
    $region12: #{tpu_custom_call.1} parent=1 // pred_region
      _
    $region13: #{tpu_custom_call.1} parent=1 // pred_fallthru
      _
    // Predicated region
    $region14: #{tpu_custom_call.1} parent=1 // pred_check
      _
    $region15: #{tpu_custom_call.1} parent=1 // pred_check_branch
      %28 = sbr.rel (0) target = $region17
    $region16: #{tpu_custom_call.1} parent=1 // pred_region
      %29 = dma.done [#allocation4], 5120
    $region17: #{tpu_custom_call.1} parent=1 // pred_fallthru
      _
    %s30 = sld [smem:[#allocation2]]
    %v31 = vld [vmem:[#allocation3] sm:$0xff]
    %v32 = vld [vmem:[#allocation3 + $0x8] sm:$0xff]
    %v33 = vld [vmem:[#allocation3 + $0x10] sm:$0xff]
    %v34 = vld [vmem:[#allocation3 + $0x18] sm:$0xff]
    %v35 = vadd.f32 %v31, 0.0
    %v36 = vadd.f32 %v32, 0.0
    %v37 = vadd.f32 %v33, 0.0
    %v38 = vadd.f32 %v34, 0.0
    %v39 = vmul.f32 %v31, %v31
    %v40 = vmul.f32 %v32, %v32
    %v41 = vmul.f32 %v33, %v33
    %v42 = vmul.f32 %v34, %v34
    %v43 = vadd.f32 %v39, 0.0
    %v44 = vadd.f32 %v40, 0.0
    %v45 = vadd.f32 %v41, 0.0
    %v46 = vadd.f32 %v42, 0.0
    %v47 = vmul.f32 %v39, %v31
    %v48 = vmul.f32 %v40, %v32
    %v49 = vmul.f32 %v41, %v33
    %v50 = vmul.f32 %v42, %v34
    %v51 = vadd.f32 %v47, 0.0
    %v52 = vadd.f32 %v48, 0.0
    %v53 = vadd.f32 %v49, 0.0
    %v54 = vadd.f32 %v50, 0.0
    %v55 = vmul.f32 %v47, %v31
    %v56 = vmul.f32 %v48, %v32
    %v57 = vmul.f32 %v49, %v33
    %v58 = vmul.f32 %v50, %v34
    %v59 = vadd.f32 %v55, 0.0
    %v60 = vadd.f32 %v56, 0.0
    %v61 = vadd.f32 %v57, 0.0
    %v62 = vadd.f32 %v58, 0.0
    %v63 = vmul.f32 %v55, %v31
    %v64 = vmul.f32 %v56, %v32
    %v65 = vmul.f32 %v57, %v33
    %v66 = vmul.f32 %v58, %v34
    %v67 = vadd.f32 %v63, 0.0
    %v68 = vadd.f32 %v64, 0.0
    %v69 = vadd.f32 %v65, 0.0
    %v70 = vadd.f32 %v66, 0.0
    %s71 = scalar_lea.vmem [#allocation3], 32
    %v72 = vld [vmem:[%s71] sm:$0xff]
    %v73 = vld [vmem:[%s71 + $0x8] sm:$0xff]
    %v74 = vld [vmem:[%s71 + $0x10] sm:$0xff]
    %v75 = vld [vmem:[%s71 + $0x18] sm:$0xff]
    %v76 = vadd.f32 %v35, %v72
    %v77 = vadd.f32 %v36, %v73
    %v78 = vadd.f32 %v37, %v74
    %v79 = vadd.f32 %v38, %v75
    %v80 = vmul.f32 %v72, %v72
    %v81 = vmul.f32 %v73, %v73
    %v82 = vmul.f32 %v74, %v74
    %v83 = vmul.f32 %v75, %v75
    %v84 = vadd.f32 %v43, %v80
    %v85 = vadd.f32 %v44, %v81
    %v86 = vadd.f32 %v45, %v82
    %v87 = vadd.f32 %v46, %v83
    %v88 = vmul.f32 %v80, %v72
    %v89 = vmul.f32 %v81, %v73
    %v90 = vmul.f32 %v82, %v74
    %v91 = vmul.f32 %v83, %v75
    %v92 = vadd.f32 %v51, %v88
    %v93 = vadd.f32 %v52, %v89
    %v94 = vadd.f32 %v53, %v90
    %v95 = vadd.f32 %v54, %v91
    %v96 = vmul.f32 %v88, %v72
    %v97 = vmul.f32 %v89, %v73
    %v98 = vmul.f32 %v90, %v74
    %v99 = vmul.f32 %v91, %v75
    %v100 = vadd.f32 %v59, %v96
    %v101 = vadd.f32 %v60, %v97
    %v102 = vadd.f32 %v61, %v98
    %v103 = vadd.f32 %v62, %v99
    %v104 = vmul.f32 %v96, %v72
    %v105 = vmul.f32 %v97, %v73
    %v106 = vmul.f32 %v98, %v74
    %v107 = vmul.f32 %v99, %v75
    %v108 = vadd.f32 %v67, %v104
    %v109 = vadd.f32 %v68, %v105
    %v110 = vadd.f32 %v69, %v106
    %v111 = vadd.f32 %v70, %v107
    %s112 = scalar_lea.vmem [#allocation3], 64
    %v113 = vld [vmem:[%s112] sm:$0xff]
    %v114 = vld [vmem:[%s112 + $0x8] sm:$0xff]
    %v115 = vld [vmem:[%s112 + $0x10] sm:$0xff]
    %v116 = vld [vmem:[%s112 + $0x18] sm:$0xff]
    %v117 = vadd.f32 %v76, %v113
    %v118 = vadd.f32 %v77, %v114
    %v119 = vadd.f32 %v78, %v115
    %v120 = vadd.f32 %v79, %v116
    %v121 = vmul.f32 %v113, %v113
    %v122 = vmul.f32 %v114, %v114
    %v123 = vmul.f32 %v115, %v115
    %v124 = vmul.f32 %v116, %v116
    %v125 = vadd.f32 %v84, %v121
    %v126 = vadd.f32 %v85, %v122
    %v127 = vadd.f32 %v86, %v123
    %v128 = vadd.f32 %v87, %v124
    %v129 = vmul.f32 %v121, %v113
    %v130 = vmul.f32 %v122, %v114
    %v131 = vmul.f32 %v123, %v115
    %v132 = vmul.f32 %v124, %v116
    %v133 = vadd.f32 %v92, %v129
    %v134 = vadd.f32 %v93, %v130
    %v135 = vadd.f32 %v94, %v131
    %v136 = vadd.f32 %v95, %v132
    %v137 = vmul.f32 %v129, %v113
    %v138 = vmul.f32 %v130, %v114
    %v139 = vmul.f32 %v131, %v115
    %v140 = vmul.f32 %v132, %v116
    %v141 = vadd.f32 %v100, %v137
    %v142 = vadd.f32 %v101, %v138
    %v143 = vadd.f32 %v102, %v139
    %v144 = vadd.f32 %v103, %v140
    %v145 = vmul.f32 %v137, %v113
    %v146 = vmul.f32 %v138, %v114
    %v147 = vmul.f32 %v139, %v115
    %v148 = vmul.f32 %v140, %v116
    %v149 = vadd.f32 %v108, %v145
    %v150 = vadd.f32 %v109, %v146
    %v151 = vadd.f32 %v110, %v147
    %v152 = vadd.f32 %v111, %v148
    %s153 = scalar_lea.vmem [#allocation3], 96
    %v154 = vld [vmem:[%s153] sm:$0xff]
    %v155 = vld [vmem:[%s153 + $0x8] sm:$0xff]
    %v156 = vld [vmem:[%s153 + $0x10] sm:$0xff]
    %v157 = vld [vmem:[%s153 + $0x18] sm:$0xff]
    %v158 = vadd.f32 %v117, %v154
    %v159 = vadd.f32 %v118, %v155
    %v160 = vadd.f32 %v119, %v156
    %v161 = vadd.f32 %v120, %v157
    %v162 = vmul.f32 %v154, %v154
    %v163 = vmul.f32 %v155, %v155
    %v164 = vmul.f32 %v156, %v156
    %v165 = vmul.f32 %v157, %v157
    %v166 = vadd.f32 %v125, %v162
    %v167 = vadd.f32 %v126, %v163
    %v168 = vadd.f32 %v127, %v164
    %v169 = vadd.f32 %v128, %v165
    %v170 = vmul.f32 %v162, %v154
    %v171 = vmul.f32 %v163, %v155
    %v172 = vmul.f32 %v164, %v156
    %v173 = vmul.f32 %v165, %v157
    %v174 = vadd.f32 %v133, %v170
    %v175 = vadd.f32 %v134, %v171
    %v176 = vadd.f32 %v135, %v172
    %v177 = vadd.f32 %v136, %v173
    %v178 = vmul.f32 %v170, %v154
    %v179 = vmul.f32 %v171, %v155
    %v180 = vmul.f32 %v172, %v156
    %v181 = vmul.f32 %v173, %v157
    %v182 = vadd.f32 %v141, %v178
    %v183 = vadd.f32 %v142, %v179
    %v184 = vadd.f32 %v143, %v180
    %v185 = vadd.f32 %v144, %v181
    %v186 = vmul.f32 %v178, %v154
    %v187 = vmul.f32 %v179, %v155
    %v188 = vmul.f32 %v180, %v156
    %v189 = vmul.f32 %v181, %v157
    %v190 = vadd.f32 %v149, %v186
    %v191 = vadd.f32 %v150, %v187
    %v192 = vadd.f32 %v151, %v188
    %v193 = vadd.f32 %v152, %v189
    %s194 = scalar_lea.vmem [#allocation3], 128
    %v195 = vld [vmem:[%s194] sm:$0xff]
    %v196 = vld [vmem:[%s194 + $0x8] sm:$0xff]
    %v197 = vld [vmem:[%s194 + $0x10] sm:$0xff]
    %v198 = vld [vmem:[%s194 + $0x18] sm:$0xff]
    %v199 = vadd.f32 %v158, %v195
    %v200 = vadd.f32 %v159, %v196
    %v201 = vadd.f32 %v160, %v197
    %v202 = vadd.f32 %v161, %v198
    %v203 = vmul.f32 %v195, %v195
    %v204 = vmul.f32 %v196, %v196
    %v205 = vmul.f32 %v197, %v197
    %v206 = vmul.f32 %v198, %v198
    %v207 = vadd.f32 %v166, %v203
    %v208 = vadd.f32 %v167, %v204
    %v209 = vadd.f32 %v168, %v205
    %v210 = vadd.f32 %v169, %v206
    %v211 = vmul.f32 %v203, %v195
    %v212 = vmul.f32 %v204, %v196
    %v213 = vmul.f32 %v205, %v197
    %v214 = vmul.f32 %v206, %v198
    %v215 = vadd.f32 %v174, %v211
    %v216 = vadd.f32 %v175, %v212
    %v217 = vadd.f32 %v176, %v213
    %v218 = vadd.f32 %v177, %v214
    %v219 = vmul.f32 %v211, %v195
    %v220 = vmul.f32 %v212, %v196
    %v221 = vmul.f32 %v213, %v197
    %v222 = vmul.f32 %v214, %v198
    %v223 = vadd.f32 %v182, %v219
    %v224 = vadd.f32 %v183, %v220
    %v225 = vadd.f32 %v184, %v221
    %v226 = vadd.f32 %v185, %v222
    %v227 = vmul.f32 %v219, %v195
    %v228 = vmul.f32 %v220, %v196
    %v229 = vmul.f32 %v221, %v197
    %v230 = vmul.f32 %v222, %v198
    %v231 = vadd.f32 %v190, %v227
    %v232 = vadd.f32 %v191, %v228
    %v233 = vadd.f32 %v192, %v229
    %v234 = vadd.f32 %v193, %v230
    %s235 = scalar_lea.vmem [#allocation3], 160
    %v236 = vld [vmem:[%s235] sm:$0xff]
    %v237 = vld [vmem:[%s235 + $0x8] sm:$0xff]
    %v238 = vld [vmem:[%s235 + $0x10] sm:$0xff]
    %v239 = vld [vmem:[%s235 + $0x18] sm:$0xff]
    %v240 = vadd.f32 %v199, %v236
    %v241 = vadd.f32 %v200, %v237
    %v242 = vadd.f32 %v201, %v238
    %v243 = vadd.f32 %v202, %v239
    %v244 = vmul.f32 %v236, %v236
    %v245 = vmul.f32 %v237, %v237
    %v246 = vmul.f32 %v238, %v238
    %v247 = vmul.f32 %v239, %v239
    %v248 = vadd.f32 %v207, %v244
    %v249 = vadd.f32 %v208, %v245
    %v250 = vadd.f32 %v209, %v246
    %v251 = vadd.f32 %v210, %v247
    %v252 = vmul.f32 %v244, %v236
    %v253 = vmul.f32 %v245, %v237
    %v254 = vmul.f32 %v246, %v238
    %v255 = vmul.f32 %v247, %v239
    %v256 = vadd.f32 %v215, %v252
    %v257 = vadd.f32 %v216, %v253
    %v258 = vadd.f32 %v217, %v254
    %v259 = vadd.f32 %v218, %v255
    %v260 = vmul.f32 %v252, %v236
    %v261 = vmul.f32 %v253, %v237
    %v262 = vmul.f32 %v254, %v238
    %v263 = vmul.f32 %v255, %v239
    %v264 = vadd.f32 %v223, %v260
    %v265 = vadd.f32 %v224, %v261
    %v266 = vadd.f32 %v225, %v262
    %v267 = vadd.f32 %v226, %v263
    %v268 = vmul.f32 %v260, %v236
    %v269 = vmul.f32 %v261, %v237
    %v270 = vmul.f32 %v262, %v238
    %v271 = vmul.f32 %v263, %v239
    %v272 = vadd.f32 %v231, %v268
    %v273 = vadd.f32 %v232, %v269
    %v274 = vadd.f32 %v233, %v270
    %v275 = vadd.f32 %v234, %v271
    %s276 = scalar_lea.vmem [#allocation3], 192
    %v277 = vld [vmem:[%s276] sm:$0xff]
    %v278 = vld [vmem:[%s276 + $0x8] sm:$0xff]
    %v279 = vld [vmem:[%s276 + $0x10] sm:$0xff]
    %v280 = vld [vmem:[%s276 + $0x18] sm:$0xff]
    %v281 = vadd.f32 %v240, %v277
    %v282 = vadd.f32 %v241, %v278
    %v283 = vadd.f32 %v242, %v279
    %v284 = vadd.f32 %v243, %v280
    %v285 = vmul.f32 %v277, %v277
    %v286 = vmul.f32 %v278, %v278
    %v287 = vmul.f32 %v279, %v279
    %v288 = vmul.f32 %v280, %v280
    %v289 = vadd.f32 %v248, %v285
    %v290 = vadd.f32 %v249, %v286
    %v291 = vadd.f32 %v250, %v287
    %v292 = vadd.f32 %v251, %v288
    %v293 = vmul.f32 %v285, %v277
    %v294 = vmul.f32 %v286, %v278
    %v295 = vmul.f32 %v287, %v279
    %v296 = vmul.f32 %v288, %v280
    %v297 = vadd.f32 %v256, %v293
    %v298 = vadd.f32 %v257, %v294
    %v299 = vadd.f32 %v258, %v295
    %v300 = vadd.f32 %v259, %v296
    %v301 = vmul.f32 %v293, %v277
    %v302 = vmul.f32 %v294, %v278
    %v303 = vmul.f32 %v295, %v279
    %v304 = vmul.f32 %v296, %v280
    %v305 = vadd.f32 %v264, %v301
    %v306 = vadd.f32 %v265, %v302
    %v307 = vadd.f32 %v266, %v303
    %v308 = vadd.f32 %v267, %v304
    %v309 = vmul.f32 %v301, %v277
    %v310 = vmul.f32 %v302, %v278
    %v311 = vmul.f32 %v303, %v279
    %v312 = vmul.f32 %v304, %v280
    %v313 = vadd.f32 %v272, %v309
    %v314 = vadd.f32 %v273, %v310
    %v315 = vadd.f32 %v274, %v311
    %v316 = vadd.f32 %v275, %v312
    %s317 = scalar_lea.vmem [#allocation3], 224
    %v318 = vld [vmem:[%s317] sm:$0xff]
    %v319 = vld [vmem:[%s317 + $0x8] sm:$0xff]
    %v320 = vld [vmem:[%s317 + $0x10] sm:$0xff]
    %v321 = vld [vmem:[%s317 + $0x18] sm:$0xff]
    %v322 = vadd.f32 %v281, %v318
    %v323 = vadd.f32 %v282, %v319
    %v324 = vadd.f32 %v283, %v320
    %v325 = vadd.f32 %v284, %v321
    %v326 = vmul.f32 %v318, %v318
    %v327 = vmul.f32 %v319, %v319
    %v328 = vmul.f32 %v320, %v320
    %v329 = vmul.f32 %v321, %v321
    %v330 = vadd.f32 %v289, %v326
    %v331 = vadd.f32 %v290, %v327
    %v332 = vadd.f32 %v291, %v328
    %v333 = vadd.f32 %v292, %v329
    %v334 = vmul.f32 %v326, %v318
    %v335 = vmul.f32 %v327, %v319
    %v336 = vmul.f32 %v328, %v320
    %v337 = vmul.f32 %v329, %v321
    %v338 = vadd.f32 %v297, %v334
    %v339 = vadd.f32 %v298, %v335
    %v340 = vadd.f32 %v299, %v336
    %v341 = vadd.f32 %v300, %v337
    %v342 = vmul.f32 %v334, %v318
    %v343 = vmul.f32 %v335, %v319
    %v344 = vmul.f32 %v336, %v320
    %v345 = vmul.f32 %v337, %v321
    %v346 = vadd.f32 %v305, %v342
    %v347 = vadd.f32 %v306, %v343
    %v348 = vadd.f32 %v307, %v344
    %v349 = vadd.f32 %v308, %v345
    %v350 = vmul.f32 %v342, %v318
    %v351 = vmul.f32 %v343, %v319
    %v352 = vmul.f32 %v344, %v320
    %v353 = vmul.f32 %v345, %v321
    %v354 = vadd.f32 %v313, %v350
    %v355 = vadd.f32 %v314, %v351
    %v356 = vadd.f32 %v315, %v352
    %v357 = vadd.f32 %v316, %v353
    %s358 = scalar_lea.vmem [#allocation3], 256
    %v359 = vld [vmem:[%s358] sm:$0xff]
    %v360 = vld [vmem:[%s358 + $0x8] sm:$0xff]
    %v361 = vld [vmem:[%s358 + $0x10] sm:$0xff]
    %v362 = vld [vmem:[%s358 + $0x18] sm:$0xff]
    %v363 = vadd.f32 %v322, %v359
    %v364 = vadd.f32 %v323, %v360
    %v365 = vadd.f32 %v324, %v361
    %v366 = vadd.f32 %v325, %v362
    %v367 = vmul.f32 %v359, %v359
    %v368 = vmul.f32 %v360, %v360
    %v369 = vmul.f32 %v361, %v361
    %v370 = vmul.f32 %v362, %v362
    %v371 = vadd.f32 %v330, %v367
    %v372 = vadd.f32 %v331, %v368
    %v373 = vadd.f32 %v332, %v369
    %v374 = vadd.f32 %v333, %v370
    %v375 = vmul.f32 %v367, %v359
    %v376 = vmul.f32 %v368, %v360
    %v377 = vmul.f32 %v369, %v361
    %v378 = vmul.f32 %v370, %v362
    %v379 = vadd.f32 %v338, %v375
    %v380 = vadd.f32 %v339, %v376
    %v381 = vadd.f32 %v340, %v377
    %v382 = vadd.f32 %v341, %v378
    %v383 = vmul.f32 %v375, %v359
    %v384 = vmul.f32 %v376, %v360
    %v385 = vmul.f32 %v377, %v361
    %v386 = vmul.f32 %v378, %v362
    %v387 = vadd.f32 %v346, %v383
    %v388 = vadd.f32 %v347, %v384
    %v389 = vadd.f32 %v348, %v385
    %v390 = vadd.f32 %v349, %v386
    %v391 = vmul.f32 %v383, %v359
    %v392 = vmul.f32 %v384, %v360
    %v393 = vmul.f32 %v385, %v361
    %v394 = vmul.f32 %v386, %v362
    %v395 = vadd.f32 %v354, %v391
    %v396 = vadd.f32 %v355, %v392
    %v397 = vadd.f32 %v356, %v393
    %v398 = vadd.f32 %v357, %v394
    %s399 = scalar_lea.vmem [#allocation3], 288
    %v400 = vld [vmem:[%s399] sm:$0xff]
    %v401 = vld [vmem:[%s399 + $0x8] sm:$0xff]
    %v402 = vld [vmem:[%s399 + $0x10] sm:$0xff]
    %v403 = vld [vmem:[%s399 + $0x18] sm:$0xff]
    %v404 = vadd.f32 %v363, %v400
    %v405 = vadd.f32 %v364, %v401
    %v406 = vadd.f32 %v365, %v402
    %v407 = vadd.f32 %v366, %v403
    %v408 = vmul.f32 %v400, %v400
    %v409 = vmul.f32 %v401, %v401
    %v410 = vmul.f32 %v402, %v402
    %v411 = vmul.f32 %v403, %v403
    %v412 = vadd.f32 %v371, %v408
    %v413 = vadd.f32 %v372, %v409
    %v414 = vadd.f32 %v373, %v410
    %v415 = vadd.f32 %v374, %v411
    %v416 = vmul.f32 %v408, %v400
    %v417 = vmul.f32 %v409, %v401
    %v418 = vmul.f32 %v410, %v402
    %v419 = vmul.f32 %v411, %v403
    %v420 = vadd.f32 %v379, %v416
    %v421 = vadd.f32 %v380, %v417
    %v422 = vadd.f32 %v381, %v418
    %v423 = vadd.f32 %v382, %v419
    %v424 = vmul.f32 %v416, %v400
    %v425 = vmul.f32 %v417, %v401
    %v426 = vmul.f32 %v418, %v402
    %v427 = vmul.f32 %v419, %v403
    %v428 = vadd.f32 %v387, %v424
    %v429 = vadd.f32 %v388, %v425
    %v430 = vadd.f32 %v389, %v426
    %v431 = vadd.f32 %v390, %v427
    %v432 = vmul.f32 %v424, %v400
    %v433 = vmul.f32 %v425, %v401
    %v434 = vmul.f32 %v426, %v402
    %v435 = vmul.f32 %v427, %v403
    %v436 = vadd.f32 %v395, %v432
    %v437 = vadd.f32 %v396, %v433
    %v438 = vadd.f32 %v397, %v434
    %v439 = vadd.f32 %v398, %v435
    %v440 = vld [vmem:[%s1] sm:$0xff]
    %v441 = vld [vmem:[%s1 + $0x8] sm:$0xff]
    %v442 = vld [vmem:[%s1 + $0x10] sm:$0xff]
    %v443 = vld [vmem:[%s1 + $0x18] sm:$0xff]
    %445 = vset.pattern.permute.xlu0 0
    %446 = vperm.xlu0 %445, %v440
    %v447 = vpop.permute.xlu0 %446
    %450 = vset.pattern.permute.xlu0 0
    %451 = vperm.xlu0 %450, %v441
    %v452 = vpop.permute.xlu0 %451
    %455 = vset.pattern.permute.xlu0 0
    %456 = vperm.xlu0 %455, %v442
    %v457 = vpop.permute.xlu0 %456
    %460 = vset.pattern.permute.xlu0 0
    %461 = vperm.xlu0 %460, %v443
    %v462 = vpop.permute.xlu0 %461
    %v464 = vmul.f32 %v404, %v447
    %v465 = vmul.f32 %v405, %v452
    %v466 = vmul.f32 %v406, %v457
    %v467 = vmul.f32 %v407, %v462
    %v468 = vmul.f32 %v404, %v404
    %v469 = vmul.f32 %v405, %v405
    %v470 = vmul.f32 %v406, %v406
    %v471 = vmul.f32 %v407, %v407
    %v472 = vsub.f32 %v468, %v412
    %v473 = vsub.f32 %v469, %v413
    %v474 = vsub.f32 %v470, %v414
    %v475 = vsub.f32 %v471, %v415
    %v476 = vmul.f32 %v472, 0.5
    %v477 = vmul.f32 %v473, 0.5
    %v478 = vmul.f32 %v474, 0.5
    %v479 = vmul.f32 %v475, 0.5
    %s480 = scalar_lea.vmem %s1, 32
    %v481 = vld [vmem:[%s480] sm:$0xff]
    %v482 = vld [vmem:[%s480 + $0x8] sm:$0xff]
    %v483 = vld [vmem:[%s480 + $0x10] sm:$0xff]
    %v484 = vld [vmem:[%s480 + $0x18] sm:$0xff]
    %486 = vset.pattern.permute.xlu0 0
    %487 = vperm.xlu0 %486, %v481
    %v488 = vpop.permute.xlu0 %487
    %491 = vset.pattern.permute.xlu0 0
    %492 = vperm.xlu0 %491, %v482
    %v493 = vpop.permute.xlu0 %492
    %496 = vset.pattern.permute.xlu0 0
    %497 = vperm.xlu0 %496, %v483
    %v498 = vpop.permute.xlu0 %497
    %501 = vset.pattern.permute.xlu0 0
    %502 = vperm.xlu0 %501, %v484
    %v503 = vpop.permute.xlu0 %502
    %v505 = vmul.f32 %v476, %v488
    %v506 = vmul.f32 %v477, %v493
    %v507 = vmul.f32 %v478, %v498
    %v508 = vmul.f32 %v479, %v503
    %v509 = vadd.f32 %v464, %v505
    %v510 = vadd.f32 %v465, %v506
    %v511 = vadd.f32 %v466, %v507
    %v512 = vadd.f32 %v467, %v508
    %v513 = vmul.f32 %v476, %v404
    %v514 = vmul.f32 %v477, %v405
    %v515 = vmul.f32 %v478, %v406
    %v516 = vmul.f32 %v479, %v407
    %v517 = vmul.f32 %v404, %v412
    %v518 = vmul.f32 %v405, %v413
    %v519 = vmul.f32 %v406, %v414
    %v520 = vmul.f32 %v407, %v415
    %v521 = vsub.f32 %v513, %v517
    %v522 = vsub.f32 %v514, %v518
    %v523 = vsub.f32 %v515, %v519
    %v524 = vsub.f32 %v516, %v520
    %v525 = vadd.f32 %v521, %v420
    %v526 = vadd.f32 %v522, %v421
    %v527 = vadd.f32 %v523, %v422
    %v528 = vadd.f32 %v524, %v423
    %v529 = vmul.f32 %v525, 0.33333334
    %v530 = vmul.f32 %v526, 0.33333334
    %v531 = vmul.f32 %v527, 0.33333334
    %v532 = vmul.f32 %v528, 0.33333334
    %s533 = scalar_lea.vmem %s1, 64
    %v534 = vld [vmem:[%s533] sm:$0xff]
    %v535 = vld [vmem:[%s533 + $0x8] sm:$0xff]
    %v536 = vld [vmem:[%s533 + $0x10] sm:$0xff]
    %v537 = vld [vmem:[%s533 + $0x18] sm:$0xff]
    %539 = vset.pattern.permute.xlu0 0
    %540 = vperm.xlu0 %539, %v534
    %v541 = vpop.permute.xlu0 %540
    %544 = vset.pattern.permute.xlu0 0
    %545 = vperm.xlu0 %544, %v535
    %v546 = vpop.permute.xlu0 %545
    %549 = vset.pattern.permute.xlu0 0
    %550 = vperm.xlu0 %549, %v536
    %v551 = vpop.permute.xlu0 %550
    %554 = vset.pattern.permute.xlu0 0
    %555 = vperm.xlu0 %554, %v537
    %v556 = vpop.permute.xlu0 %555
    %v558 = vmul.f32 %v529, %v541
    %v559 = vmul.f32 %v530, %v546
    %v560 = vmul.f32 %v531, %v551
    %v561 = vmul.f32 %v532, %v556
    %v562 = vadd.f32 %v509, %v558
    %v563 = vadd.f32 %v510, %v559
    %v564 = vadd.f32 %v511, %v560
    %v565 = vadd.f32 %v512, %v561
    %v566 = vmul.f32 %v529, %v404
    %v567 = vmul.f32 %v530, %v405
    %v568 = vmul.f32 %v531, %v406
    %v569 = vmul.f32 %v532, %v407
    %v570 = vmul.f32 %v476, %v412
    %v571 = vmul.f32 %v477, %v413
    %v572 = vmul.f32 %v478, %v414
    %v573 = vmul.f32 %v479, %v415
    %v574 = vsub.f32 %v566, %v570
    %v575 = vsub.f32 %v567, %v571
    %v576 = vsub.f32 %v568, %v572
    %v577 = vsub.f32 %v569, %v573
    %v578 = vmul.f32 %v404, %v420
    %v579 = vmul.f32 %v405, %v421
    %v580 = vmul.f32 %v406, %v422
    %v581 = vmul.f32 %v407, %v423
    %v582 = vadd.f32 %v574, %v578
    %v583 = vadd.f32 %v575, %v579
    %v584 = vadd.f32 %v576, %v580
    %v585 = vadd.f32 %v577, %v581
    %v586 = vsub.f32 %v582, %v428
    %v587 = vsub.f32 %v583, %v429
    %v588 = vsub.f32 %v584, %v430
    %v589 = vsub.f32 %v585, %v431
    %v590 = vmul.f32 %v586, 0.25
    %v591 = vmul.f32 %v587, 0.25
    %v592 = vmul.f32 %v588, 0.25
    %v593 = vmul.f32 %v589, 0.25
    %s594 = scalar_lea.vmem %s1, 96
    %v595 = vld [vmem:[%s594] sm:$0xff]
    %v596 = vld [vmem:[%s594 + $0x8] sm:$0xff]
    %v597 = vld [vmem:[%s594 + $0x10] sm:$0xff]
    %v598 = vld [vmem:[%s594 + $0x18] sm:$0xff]
    %600 = vset.pattern.permute.xlu0 0
    %601 = vperm.xlu0 %600, %v595
    %v602 = vpop.permute.xlu0 %601
    %605 = vset.pattern.permute.xlu0 0
    %606 = vperm.xlu0 %605, %v596
    %v607 = vpop.permute.xlu0 %606
    %610 = vset.pattern.permute.xlu0 0
    %611 = vperm.xlu0 %610, %v597
    %v612 = vpop.permute.xlu0 %611
    %615 = vset.pattern.permute.xlu0 0
    %616 = vperm.xlu0 %615, %v598
    %v617 = vpop.permute.xlu0 %616
    %v619 = vmul.f32 %v590, %v602
    %v620 = vmul.f32 %v591, %v607
    %v621 = vmul.f32 %v592, %v612
    %v622 = vmul.f32 %v593, %v617
    %v623 = vadd.f32 %v562, %v619
    %v624 = vadd.f32 %v563, %v620
    %v625 = vadd.f32 %v564, %v621
    %v626 = vadd.f32 %v565, %v622
    %v627 = vmul.f32 %v590, %v404
    %v628 = vmul.f32 %v591, %v405
    %v629 = vmul.f32 %v592, %v406
    %v630 = vmul.f32 %v593, %v407
    %v631 = vmul.f32 %v529, %v412
    %v632 = vmul.f32 %v530, %v413
    %v633 = vmul.f32 %v531, %v414
    %v634 = vmul.f32 %v532, %v415
    %v635 = vsub.f32 %v627, %v631
    %v636 = vsub.f32 %v628, %v632
    %v637 = vsub.f32 %v629, %v633
    %v638 = vsub.f32 %v630, %v634
    %v639 = vmul.f32 %v476, %v420
    %v640 = vmul.f32 %v477, %v421
    %v641 = vmul.f32 %v478, %v422
    %v642 = vmul.f32 %v479, %v423
    %v643 = vadd.f32 %v635, %v639
    %v644 = vadd.f32 %v636, %v640
    %v645 = vadd.f32 %v637, %v641
    %v646 = vadd.f32 %v638, %v642
    %v647 = vmul.f32 %v404, %v428
    %v648 = vmul.f32 %v405, %v429
    %v649 = vmul.f32 %v406, %v430
    %v650 = vmul.f32 %v407, %v431
    %v651 = vsub.f32 %v643, %v647
    %v652 = vsub.f32 %v644, %v648
    %v653 = vsub.f32 %v645, %v649
    %v654 = vsub.f32 %v646, %v650
    %v655 = vadd.f32 %v651, %v436
    %v656 = vadd.f32 %v652, %v437
    %v657 = vadd.f32 %v653, %v438
    %v658 = vadd.f32 %v654, %v439
    %v659 = vmul.f32 %v655, 0.2
    %v660 = vmul.f32 %v656, 0.2
    %v661 = vmul.f32 %v657, 0.2
    %v662 = vmul.f32 %v658, 0.2
    %s663 = scalar_lea.vmem %s1, 128
    %v664 = vld [vmem:[%s663] sm:$0xff]
    %v665 = vld [vmem:[%s663 + $0x8] sm:$0xff]
    %v666 = vld [vmem:[%s663 + $0x10] sm:$0xff]
    %v667 = vld [vmem:[%s663 + $0x18] sm:$0xff]
    %669 = vset.pattern.permute.xlu0 0
    %670 = vperm.xlu0 %669, %v664
    %v671 = vpop.permute.xlu0 %670
    %674 = vset.pattern.permute.xlu0 0
    %675 = vperm.xlu0 %674, %v665
    %v676 = vpop.permute.xlu0 %675
    %679 = vset.pattern.permute.xlu0 0
    %680 = vperm.xlu0 %679, %v666
    %v681 = vpop.permute.xlu0 %680
    %684 = vset.pattern.permute.xlu0 0
    %685 = vperm.xlu0 %684, %v667
    %v686 = vpop.permute.xlu0 %685
    %v688 = vmul.f32 %v659, %v671
    %v689 = vmul.f32 %v660, %v676
    %v690 = vmul.f32 %v661, %v681
    %v691 = vmul.f32 %v662, %v686
    %v692 = vadd.f32 %v623, %v688
    %v693 = vadd.f32 %v624, %v689
    %v694 = vadd.f32 %v625, %v690
    %v695 = vadd.f32 %v626, %v691
    %v696 = vadd.f32 %v692, %v693
    %v697 = vadd.f32 %v696, %v694
    %v698 = vadd.f32 %v697, %v695
    %v699 = vrot.slane %v698, 4
    %v700 = vadd.f32 %v698, %v699
    %v701 = vrot.slane %v700, 2
    %v702 = vadd.f32 %v700, %v701
    %v703 = vrot.slane %v702, 1
    %v704 = vadd.f32 %v702, %v703
    %v705 = vstv %s30
    %v706 = vadd.f32 %v704, %v705
    %707 = vst [vmem:[#allocation6] sm:$0x1] %v706
    // Predicated region
    $region18: #{tpu_custom_call.1} parent=1 // pred_check
      _
    $region19: #{tpu_custom_call.1} parent=1 // pred_check_branch
      %709 = sbr.rel (0) target = $region21
    $region20: #{tpu_custom_call.1} parent=1 // pred_region
      %s711 = ssub.s32 16, 16
      %712 = vsyncadd [#allocation5], %s711
      %s714 = sshll.u32 [#allocation6], 4
      %s715 = int_to_ptr.vmem [resolvable:$true] %s714
      %717 = dma.vmem_to_hbm [thread:$0]  %s715, 16, %s3, [#allocation5]
    $region21: #{tpu_custom_call.1} parent=1 // pred_fallthru
      _
    // Predicated region
    $region22: #{tpu_custom_call.1} parent=1 // pred_check
      _
    $region23: #{tpu_custom_call.1} parent=1 // pred_check_branch
      %719 = sbr.rel (0) target = $region25
    $region24: #{tpu_custom_call.1} parent=1 // pred_region
      %720 = dma.done [#allocation5], 16
    $region25: #{tpu_custom_call.1} parent=1 // pred_fallthru
      _
    %721 = vsyncpa [#allocation4], 1
    %722 = vsyncpa [#allocation5], 1

</llo_original>
